<compile_context>
chip_gen: v6e
topology: v6e:2x2x1
jax: 0.10.0
libtpu: 0.0.40
codegen_flags: <defaults>
</compile_context>

<pallas_src>
import functools
import math
import re

import jax
import jax.numpy as jnp
from jax.experimental import pallas as pl
from jax.experimental.pallas import tpu as pltpu


def _round_up(x, m):
    return (x + m - 1) // m * m


# ----------------------------------------------------------------------------
# Chip introspection (generation + physical VMEM), with safe fallbacks.
# ----------------------------------------------------------------------------
def _tpu_info():
    """Returns (tpu_generation or None, physical VMEM bytes per core)."""
    gen = None
    try:
        kind = jax.devices()[0].device_kind
        m = re.search(r"v(\d+)", kind.lower())
        if m:
            gen = int(m.group(1))
    except Exception:
        pass
    vmem = None
    try:
        info = pltpu.get_tpu_info()
        vmem = getattr(info, "vmem_capacity_bytes", None)
    except Exception:
        pass
    if vmem is None:
        # v7x has 64 MiB/TC; earlier generations 128 MiB.
        vmem = (64 if (gen is not None and gen >= 7) else 128) * 1024 * 1024
    return gen, int(vmem)


def _vmem_budget(vmem_bytes):
    """(tile budget bytes, vmem_limit_bytes) with pipeline headroom."""
    if vmem_bytes <= 64 * 1024 * 1024:          # v7x-class (64 MiB physical)
        budget = 40 * 1024 * 1024
    else:                                       # v5e / v6e (128 MiB physical)
        budget = 64 * 1024 * 1024
    vmem_limit = min(vmem_bytes - 8 * 1024 * 1024, budget + 16 * 1024 * 1024)
    return budget, vmem_limit


# ----------------------------------------------------------------------------
# Kernel
# ----------------------------------------------------------------------------
def wsoftmax_kernel(ab_ref, x_ref, o_ref, *, compute_dtype):
    # ab_ref: SMEM (2,) f32 -> [scale_a, scale_b] (softplus already applied
    #         host-side when monotone=True; they are scalar parameters).
    # x_ref / o_ref: VMEM (tm, N) tiles; reduction axis is the lane axis.
    a = ab_ref[0]
    b = ab_ref[1]

    x = x_ref[...]
    if x.dtype != compute_dtype:
        x = x.astype(compute_dtype)

    x_max = jnp.max(x, axis=-1, keepdims=True)
    x_min = jnp.min(x, axis=-1, keepdims=True)

    # Reuse t = x - x_max for both exponents (one fewer full-tile traversal):
    #   softmax numerator: exp(t)
    #   softmin numerator: exp(x_min - x) == exp((x_min - x_max) - t)
    t = x - x_max
    e_pos = jnp.exp(t)
    e_neg = jnp.exp((x_min - x_max) - t)

    # Row sums always accumulate in f32 (even on the bf16 compute path).
    s_pos = jnp.sum(e_pos, axis=-1, keepdims=True, dtype=jnp.float32)
    s_neg = jnp.sum(e_neg, axis=-1, keepdims=True, dtype=jnp.float32)

    # Exact per-row divide: (tm, 1) work only, so approx reciprocal buys
    # nothing and exact is free accuracy.  Fold the scalar weights in here.
    scale_pos = (a / s_pos).astype(compute_dtype)
    scale_neg = (b / s_neg).astype(compute_dtype)

    o_ref[...] = (e_pos * scale_pos - e_neg * scale_neg).astype(o_ref.dtype)


# ----------------------------------------------------------------------------
# Tile selection
# ----------------------------------------------------------------------------
def _pick_row_tile(m_rows, n, in_bytes, out_bytes, comp_bytes, budget, two_cores):
    """Largest legal row tile under the VMEM budget / DMA-size targets."""
    # Double-buffered input + output tiles, plus ~5 compute-dtype full-tile
    # temps live inside the body (t, e_pos, e_neg, products, ...).
    per_row = 2 * n * in_bytes + 2 * n * out_bytes + 5 * n * comp_bytes
    tm = budget // max(per_row, 1)
    # Cap each input DMA block near 8 MiB: >= ~2 MiB already reaches ~85% of
    # the HBM roofline; bigger only burns VMEM headroom.
    tm = min(tm, (8 * 1024 * 1024) // max(n * in_bytes, 1))
    # v7x megacore (2 TensorCores): force >= 4 grid steps when there is enough
    # work so both cores get pipelined work.  Single-TC chips keep one big
    # tile when everything fits (a split there is pure overhead).
    # TODO(synk): evaluate pltpu.CORE_PARALLEL on the row axis for v7x.
    if two_cores and m_rows >= 64:
        tm = min(tm, _round_up(pl.cdiv(m_rows, 4), 16))
    if tm >= m_rows:
        return m_rows  # single block; block dim == full array dim is always legal
    return max(16, (tm // 16) * 16)  # multiple of 16 (bf16 sublane packing)


# ----------------------------------------------------------------------------
# Wrapper
# ----------------------------------------------------------------------------
def wsoftmax(x, a, b, monotone=True, dim=-1):
    """WSoftmax forward. x: any-rank array, reduction along `dim`."""
    ndim = x.ndim
    axis = dim % ndim

    # TODO(synk): for dim != last axis, fold the transpose into the BlockSpec
    # index_map (strided tiles) instead of a host-side moveaxis (extra HBM pass).
    x_last = x if axis == ndim - 1 else jnp.moveaxis(x, axis, -1)
    lead_shape = x_last.shape[:-1]
    N = int(x_last.shape[-1])
    M = int(math.prod(lead_shape)) if lead_shape else 1
    x2 = x_last.reshape(M, N)

    if monotone:
        ca = jax.nn.softplus(jnp.asarray(a, jnp.float32))
        cb = jax.nn.softplus(jnp.asarray(b, jnp.float32))
    else:
        ca = jnp.asarray(a, jnp.float32)
        cb = jnp.asarray(b, jnp.float32)
    scal = jnp.stack([ca, cb])

    gen, vmem_bytes = _tpu_info()
    budget, vmem_limit = _vmem_budget(vmem_bytes)
    two_cores = gen is not None and gen >= 7

    # bf16 tile math only where the VPU/EUP support it (v6e+); v5e stays f32.
    if x2.dtype == jnp.bfloat16 and gen is not None and gen >= 6:
        compute_dtype = jnp.bfloat16
    else:
        compute_dtype = jnp.float32

    in_bytes = x2.dtype.itemsize
    out_bytes = x2.dtype.itemsize
    comp_bytes = jnp.dtype(compute_dtype).itemsize

    per_row = 2 * N * in_bytes + 2 * N * out_bytes + 5 * N * comp_bytes
    if per_row * 16 > budget:
        # TODO(synk): very large N needs a 2-axis grid with an online two-pass
        # (running max/min + running sums in VMEM scratch, finalize via
        # pl.when).  Fall back to plain XLA for robustness until then.
        xf = x2.astype(jnp.float32)
        out2 = (ca * jax.nn.softmax(xf, axis=-1)
                - cb * jax.nn.softmax(-xf, axis=-1)).astype(x2.dtype)
    else:
        tm = _pick_row_tile(M, N, in_bytes, out_bytes, comp_bytes, budget, two_cores)
        kernel = functools.partial(wsoftmax_kernel, compute_dtype=compute_dtype)
        # grid = cdiv(M, tm): ragged M handled by a masked tail block — no
        # host-side pad or trailing slice (rows are independent; garbage rows
        # in the tail block are never written back).
        out2 = pl.pallas_call(
            kernel,
            out_shape=jax.ShapeDtypeStruct((M, N), x2.dtype),
            grid=(pl.cdiv(M, tm),),
            in_specs=[
                pl.BlockSpec(memory_space=pltpu.MemorySpace.SMEM),  # [a, b]
                pl.BlockSpec((tm, N), lambda i: (i, 0)),            # x row tile
            ],
            out_specs=pl.BlockSpec((tm, N), lambda i: (i, 0)),
            compiler_params=pltpu.CompilerParams(
                dimension_semantics=("parallel",),
                vmem_limit_bytes=int(vmem_limit),
            ),
        )(scal, x2)

    out = out2.reshape(*lead_shape, N)
    if axis != ndim - 1:
        out = jnp.moveaxis(out, -1, axis)
    return out


# ----------------------------------------------------------------------------
# Self-test
# ----------------------------------------------------------------------------
if __name__ == "__main__":
    # Deterministic parameters, matching nn.Parameter(torch.tensor(0.5)).
    a_param = jnp.float32(0.5)
    b_param = jnp.float32(0.5)

    def ref_fn(x, dim):
        sp_a = jax.nn.softplus(a_param)
        sp_b = jax.nn.softplus(b_param)
        xf = x.astype(jnp.float32)
        r = sp_a * jax.nn.softmax(xf, axis=dim) - sp_b * jax.nn.softmax(-xf, axis=dim)
        return r

    key = jax.random.PRNGKey(0)
    k1, k2, k3 = jax.random.split(key, 3)

    # 1) f32, reduction over the last (lane) dim.
    x1 = jax.random.normal(k1, (2, 8, 128), dtype=jnp.float32)
    o1 = jax.block_until_ready(wsoftmax(x1, a_param, b_param, monotone=True, dim=-1))
    assert o1.shape == x1.shape
    assert jnp.allclose(o1, ref_fn(x1, -1), atol=1e-5, rtol=1e-4), "f32 dim=-1 mismatch"

    # 2) f32, reduction over a middle dim (exercises the moveaxis path) with a
    #    non-128-multiple reduction length.
    x2 = jax.random.normal(k2, (2, 24, 40), dtype=jnp.float32)
    o2 = jax.block_until_ready(wsoftmax(x2, a_param, b_param, monotone=True, dim=1))
    assert o2.shape == x2.shape
    assert jnp.allclose(o2, ref_fn(x2, 1), atol=1e-5, rtol=1e-4), "f32 dim=1 mismatch"

    # 3) bf16 input (bf16 tile-math path on v6e/v7x, f32 math on v5e).
    x3 = jax.random.normal(k3, (2, 8, 128), dtype=jnp.float32).astype(jnp.bfloat16)
    o3 = jax.block_until_ready(wsoftmax(x3, a_param, b_param, monotone=True, dim=-1))
    assert o3.shape == x3.shape
    assert jnp.allclose(o3.astype(jnp.float32), ref_fn(x3, -1),
                        atol=3e-2, rtol=3e-2), "bf16 mismatch"

    print("KERNEL_OK")
</pallas_src>

<mosaic_0001>
module attributes {stable_mosaic.version = 11 : i64} {
  func.func @wsoftmax_kernel(%arg0: i32, %arg1: memref<2xf32, #tpu.memory_space<smem>>, %arg2: memref<16x128xf32, #tpu.memory_space<vmem>>, %arg3: memref<16x128xf32, #tpu.memory_space<vmem>>) attributes {dimension_semantics = [#tpu.dimension_semantics<parallel>], iteration_bounds = array<i64: 1>, scalar_prefetch = 0 : i64, scratch_operands = 0 : i64, tpu.core_type = #tpu.core_type<tc>, window_params = [{transform_indices = @transform_0, window_bounds = array<i64: 2>}, {transform_indices = @transform_1, window_bounds = array<i64: 16, 128>}, {transform_indices = @transform_2, window_bounds = array<i64: 16, 128>}]} {
    %c0 = arith.constant 0 : index
    %0 = memref.load %arg1[%c0] : memref<2xf32, #tpu.memory_space<smem>>
    %c1 = arith.constant 1 : index
    %1 = memref.load %arg1[%c1] : memref<2xf32, #tpu.memory_space<smem>>
    %c0_0 = arith.constant 0 : index
    %c0_1 = arith.constant 0 : index
    %2 = vector.load %arg2[%c0_0, %c0_1] : memref<16x128xf32, #tpu.memory_space<vmem>>, vector<16x128xf32>
    %cst = arith.constant dense<0xFF800000> : vector<16xf32>
    %3 = vector.multi_reduction <maximumf>, %2, %cst [1] : vector<16x128xf32> to vector<16xf32>
    %4 = vector.shape_cast %3 : vector<16xf32> to vector<16x1xf32>
    %cst_2 = arith.constant dense<0x7F800000> : vector<16xf32>
    %5 = vector.multi_reduction <minimumf>, %2, %cst_2 [1] : vector<16x128xf32> to vector<16xf32>
    %6 = vector.shape_cast %5 : vector<16xf32> to vector<16x1xf32>
    %7 = vector.broadcast %4 : vector<16x1xf32> to vector<16x128xf32>
    %8 = arith.subf %2, %7 : vector<16x128xf32>
    %9 = math.exp %8 : vector<16x128xf32>
    %10 = arith.subf %6, %4 : vector<16x1xf32>
    %11 = vector.broadcast %10 : vector<16x1xf32> to vector<16x128xf32>
    %12 = arith.subf %11, %8 : vector<16x128xf32>
    %13 = math.exp %12 : vector<16x128xf32>
    %cst_3 = arith.constant dense<0.000000e+00> : vector<16xf32>
    %14 = vector.multi_reduction <add>, %9, %cst_3 [1] : vector<16x128xf32> to vector<16xf32>
    %15 = vector.shape_cast %14 : vector<16xf32> to vector<16x1xf32>
    %cst_4 = arith.constant dense<0.000000e+00> : vector<16xf32>
    %16 = vector.multi_reduction <add>, %13, %cst_4 [1] : vector<16x128xf32> to vector<16xf32>
    %17 = vector.shape_cast %16 : vector<16xf32> to vector<16x1xf32>
    %18 = vector.broadcast %0 : f32 to vector<16x1xf32>
    %19 = arith.divf %18, %15 : vector<16x1xf32>
    %20 = vector.broadcast %1 : f32 to vector<16x1xf32>
    %21 = arith.divf %20, %17 : vector<16x1xf32>
    %22 = vector.broadcast %19 : vector<16x1xf32> to vector<16x128xf32>
    %23 = arith.mulf %9, %22 : vector<16x128xf32>
    %24 = vector.broadcast %21 : vector<16x1xf32> to vector<16x128xf32>
    %25 = arith.mulf %13, %24 : vector<16x128xf32>
    %26 = arith.subf %23, %25 : vector<16x128xf32>
    %c0_5 = arith.constant 0 : index
    %c0_6 = arith.constant 0 : index
    %27 = vector.load %arg3[%c0_5, %c0_6] : memref<16x128xf32, #tpu.memory_space<vmem>>, vector<16x128xf32>
    tpu.vector_store %arg3[%c0_5, %c0_6], %26 {strides = array<i32>} : memref<16x128xf32, #tpu.memory_space<vmem>>, vector<16x128xf32>,
    return
  }
  func.func @transform_0(%arg0: i32) -> i32 {
    %c0_i32 = arith.constant 0 : i32
    %c0_i32_0 = arith.constant 0 : i32
    return %c0_i32 : i32
  }
  func.func @transform_1(%arg0: i32) -> (i32, i32) {
    %c0_i32 = arith.constant 0 : i32
    %c0_i32_0 = arith.constant 0 : i32
    return %arg0, %c0_i32 : i32, i32
  }
  func.func @transform_2(%arg0: i32) -> (i32, i32) {
    %c0_i32 = arith.constant 0 : i32
    %c0_i32_0 = arith.constant 0 : i32
    return %arg0, %c0_i32 : i32, i32
  }
}

</mosaic_0001>

<llo_original>
// kernel: tpu_custom_call.1
$region0: #{tpu_custom_call.1}
  #allocation0 [shape = 'u32[]', space=smem, size = 0x4, offset = 0x4, fixed_abs, tag = 'smem constant byte address 0x4 - core index']
  #allocation1 [shape = 'u32[144,128]{1,0:T(1,128)}', space=vmem, size = 0x12000, scoped, tag = 'internal scratch']
  %s0 = inlined_call_operand.hbm [shape: f32[2], index: 0, kind: input, shape index: {}]
  %s1 = inlined_call_operand.hbm [shape: f32[16,128], index: 1, kind: input, shape index: {}]
  %s2 = inlined_call_operand.hbm [shape: f32[16,128], index: 2, kind: output, shape index: {}]
  %s3 = sld [smem:[#allocation0]]
  $region26: #{tpu_custom_call.1} parent=0
    _
  %s5 = ssub.s32 1, %s3
  %s6 = scalar_select 0, %s5, %s3
  $region1: #{tpu_custom_call.1} parent=0
    #allocation2 [shape = 'u8[512]{0}', space=smem, size = 0x200, scoped, tag = 'input window, operand 0, single buffered']
    #allocation3 [shape = 's32[1]{0}', space=sflag, size = 0x4, scoped, tag = 'scoped memory for tpu_custom_call.1']
    #allocation4 [shape = 's32[1]{0}', space=sflag, size = 0x4, scoped, tag = 'scoped memory for tpu_custom_call.1']
    #allocation5 [shape = 's32[1]{0}', space=sflag, size = 0x4, scoped, tag = 'scoped memory for tpu_custom_call.1']
    #allocation6 [shape = 'u8[8192]{0}', space=vmem, size = 0x2000, scoped, tag = 'input window, operand 1, single buffered']
    #allocation7 [shape = 'u8[8192]{0}', space=vmem, size = 0x2000, scoped, tag = 'output window, operand 0, single buffered']
    %7 = vsyncpa [#allocation5], 0
    %8 = vsyncpa [#allocation3], 0
    %9 = vsyncpa [#allocation4], 0
    // Predicated region
    $region2: #{tpu_custom_call.1} parent=1 // pred_check
      _
    $region3: #{tpu_custom_call.1} parent=1 // pred_check_branch
      %11 = sbr.rel (0) target = $region5
    $region4: #{tpu_custom_call.1} parent=1 // pred_region
      %s13 = ssub.s32 16, 16
      %14 = vsyncadd [#allocation5], %s13
      %17 = dma.hbm_to_smem %s0, 16, [#allocation2], [#allocation5]
    $region5: #{tpu_custom_call.1} parent=1 // pred_fallthru
      _
    // Predicated region
    $region6: #{tpu_custom_call.1} parent=1 // pred_check
      _
    $region7: #{tpu_custom_call.1} parent=1 // pred_check_branch
      %19 = sbr.rel (0) target = $region9
    $region8: #{tpu_custom_call.1} parent=1 // pred_region
      %s21 = ssub.s32 256, 256
      %22 = vsyncadd [#allocation3], %s21
      %s23 = sshll.u32 [#allocation6], 4
      %s24 = int_to_ptr.vmem [resolvable:$true] %s23
      %29 = dma.hbm_to_vmem [thread:$0]  %s1, 256, %s24, [#allocation3], 128, 128, 8
    $region9: #{tpu_custom_call.1} parent=1 // pred_fallthru
      _
    // Predicated region
    $region10: #{tpu_custom_call.1} parent=1 // pred_check
      _
    $region11: #{tpu_custom_call.1} parent=1 // pred_check_branch
      %31 = sbr.rel (0) target = $region13
    $region12: #{tpu_custom_call.1} parent=1 // pred_region
      %32 = dma.done [#allocation5], 16
    $region13: #{tpu_custom_call.1} parent=1 // pred_fallthru
      _
    // Predicated region
    $region14: #{tpu_custom_call.1} parent=1 // pred_check
      _
    $region15: #{tpu_custom_call.1} parent=1 // pred_check_branch
      %34 = sbr.rel (0) target = $region17
    $region16: #{tpu_custom_call.1} parent=1 // pred_region
      %35 = dma.done [#allocation3], 256
    $region17: #{tpu_custom_call.1} parent=1 // pred_fallthru
      _
    %36 = sfence
    %s37 = sld [smem:[#allocation2]]
    %s38 = sld [smem:[#allocation2 + $0x1]]
    %v39 = vld [vmem:[#allocation6] sm:$0xff]
    %v40 = vld [vmem:[#allocation6 + $0x8] sm:$0xff]
    %41 = vmax.xlane.f32.xlu0 %v39
    %v42 = vpop.xlane.xlu0 %41
    %43 = vmax.xlane.f32.xlu0 %v40
    %v44 = vpop.xlane.xlu0 %43
    %45 = vmin.xlane.f32.xlu0 %v39
    %v46 = vpop.xlane.xlu0 %45
    %47 = vmin.xlane.f32.xlu0 %v40
    %v48 = vpop.xlane.xlu0 %47
    %v49 = vsub.f32 %v39, %v42
    %v50 = vsub.f32 %v40, %v44
    %v51 = vmul.f32 %v49, 1.442695
    %v52 = vpow.pop %v51
    %v53 = vmul.f32 %v50, 1.442695
    %v54 = vpow.pop %v53
    %v55 = vsub.f32 %v46, %v42
    %v56 = vsub.f32 %v48, %v44
    %v57 = vsub.f32 %v55, %v49
    %v58 = vsub.f32 %v56, %v50
    %v59 = vmul.f32 %v57, 1.442695
    %v60 = vpow.pop %v59
    %v61 = vmul.f32 %v58, 1.442695
    %v62 = vpow.pop %v61
    %63 = vadd.xlane.f32.xlu0 %v52
    %v64 = vpop.xlane.xlu0 %63
    %65 = vadd.xlane.f32.xlu0 %v54
    %v66 = vpop.xlane.xlu0 %65
    %67 = vadd.xlane.f32.xlu0 %v60
    %v68 = vpop.xlane.xlu0 %67
    %69 = vadd.xlane.f32.xlu0 %v62
    %v70 = vpop.xlane.xlu0 %69
    %v71 = vstv %s37
    %v72 = vrcp.pop %v64
    %v73 = vmul.f32 %v71, %v72
    %v74 = vrcp.pop %v66
    %v75 = vmul.f32 %v71, %v74
    %v76 = vstv %s38
    %v77 = vrcp.pop %v68
    %v78 = vmul.f32 %v76, %v77
    %v79 = vrcp.pop %v70
    %v80 = vmul.f32 %v76, %v79
    %v81 = vmul.f32 %v52, %v73
    %v82 = vmul.f32 %v54, %v75
    %v83 = vmul.f32 %v60, %v78
    %v84 = vmul.f32 %v62, %v80
    %v85 = vsub.f32 %v81, %v83
    %v86 = vsub.f32 %v82, %v84
    %87 = vst [vmem:[#allocation7] sm:$0xff] %v85
    %88 = vst [vmem:[#allocation7 + $0x8] sm:$0xff] %v86
    // Predicated region
    $region18: #{tpu_custom_call.1} parent=1 // pred_check
      _
    $region19: #{tpu_custom_call.1} parent=1 // pred_check_branch
      %90 = sbr.rel (0) target = $region21
    $region20: #{tpu_custom_call.1} parent=1 // pred_region
      %s92 = ssub.s32 256, 256
      %93 = vsyncadd [#allocation4], %s92
      %s94 = sshll.u32 [#allocation7], 4
      %s95 = int_to_ptr.vmem [resolvable:$true] %s94
      %100 = dma.vmem_to_hbm [thread:$0]  %s95, 256, %s2, [#allocation4], 128, 128, 8
    $region21: #{tpu_custom_call.1} parent=1 // pred_fallthru
      _
    // Predicated region
    $region22: #{tpu_custom_call.1} parent=1 // pred_check
      _
    $region23: #{tpu_custom_call.1} parent=1 // pred_check_branch
      %102 = sbr.rel (0) target = $region25
    $region24: #{tpu_custom_call.1} parent=1 // pred_region
      %103 = dma.done [#allocation4], 256
    $region25: #{tpu_custom_call.1} parent=1 // pred_fallthru
      _
    %104 = vsyncpa [#allocation3], 1
    %105 = vsyncpa [#allocation4], 1
    %106 = vsyncpa [#allocation5], 1

</llo_original>
